<compile_context>
chip_gen: v6e
topology: v6e:2x2x1
jax: 0.10.0
libtpu: 0.0.40
codegen_flags: <defaults>
</compile_context>

<pallas_src>
import jax
import jax.numpy as jnp
from jax.experimental import pallas as pl
from jax.experimental.pallas import tpu as pltpu


def _round_up(x, m):
    return (x + m - 1) // m * m


def _vmem_capacity_bytes():
    try:
        return int(pltpu.get_tpu_info().vmem_capacity_bytes)
    except Exception:
        return 64 * 1024 * 1024   # conservative (v7x per-TC)


# ----------------------------- kernels --------------------------------------

def _layer1_kernel(x_ref, w1_ref, b1_ref, h_ref):
    # h_tile = relu(x @ W1_tile + b1_tile): bf16 MXU operands, f32 accumulate,
    # bias add + ReLU on the VPU in f32.  x block is grid-invariant (resident).
    h = jnp.dot(x_ref[...], w1_ref[...], preferred_element_type=jnp.float32)
    h = jnp.maximum(h + b1_ref[...], 0.0)
    # TODO(synk): training-mode dropout not implemented (eval-mode identity).
    h_ref[...] = h.astype(h_ref.dtype)


def _layer2_kernel(h_ref, w2_ref, b2_ref, o_ref):
    # out_tile = h @ W2_tile + b2_tile.  h block is grid-invariant (resident),
    # W2 column tiles stream through double-buffered DMA (bandwidth bound).
    out = jnp.dot(h_ref[...], w2_ref[...], preferred_element_type=jnp.float32)
    o_ref[...] = (out + b2_ref[...]).astype(o_ref.dtype)


# ------------------------ one-time parameter prep ----------------------------

def prepare_decoder_params(w1, b1, w2, b2):
    """Fold/pad/cast the decoder weights ONCE (call at init, not per forward).

    w1: (state_dim, vocab)  effective weight-norm weight (g * V / ||V||_F),
        already transposed to (in, out)
    b1: (vocab,) or (1, vocab)
    w2: (vocab, vocab)
    b2: (vocab,) or (1, vocab)
    """
    w1 = jnp.asarray(w1)
    w2 = jnp.asarray(w2)
    S, V = w1.shape
    assert w2.shape == (V, V)
    b1 = jnp.asarray(b1).reshape(1, -1)
    b2 = jnp.asarray(b2).reshape(1, -1)

    vmem = _vmem_capacity_bytes()
    S_pad = _round_up(S, 128)
    V_min = _round_up(V, 128)

    # Choose tn first (multiple of 128; 2 double-buffered bf16 W2 column tiles
    # within ~35% of VMEM), then pad the vocab up to a multiple of tn.
    budget = int(0.35 * vmem)
    tn = 128
    for cand in (2048, 1024, 512, 256, 128):
        if cand <= V_min and 2 * (V_min + cand) * cand * 2 <= budget:
            tn = cand
            break
    V_pad = _round_up(V, tn)

    return dict(
        w1=jnp.pad(w1, ((0, S_pad - S), (0, V_pad - V))).astype(jnp.bfloat16),
        b1=jnp.pad(b1, ((0, 0), (0, V_pad - V))).astype(jnp.float32),
        w2=jnp.pad(w2, ((0, V_pad - V), (0, V_pad - V))).astype(jnp.bfloat16),
        b2=jnp.pad(b2, ((0, 0), (0, V_pad - V))).astype(jnp.float32),
        S=S, V=V, S_pad=S_pad, V_pad=V_pad, tn=tn, vmem=vmem,
    )


# ------------------------------- forward ------------------------------------

def vqa_decoder_forward(x, params):
    """VQADecoder forward (eval mode) with pre-formatted params."""
    B, S = x.shape
    assert S == params["S"], "state_dim mismatch with prepared params"
    S_pad = params["S_pad"]
    V, V_pad, tn = params["V"], params["V_pad"], params["tn"]
    vmem = params["vmem"]
    out_dtype = x.dtype

    # bf16 packs two rows per sublane -> pad batch to 16 so the (16,128) bf16
    # vreg tile is fully populated (no masked packing on x@W1 or the stores).
    B_pad = _round_up(max(B, 1), 16)
    x_p = jnp.pad(x, ((0, B_pad - B), (0, S_pad - S))).astype(jnp.bfloat16)

    grid = (V_pad // tn,)

    def _limit(resident_bytes, tile_bytes):
        need = 2 * (resident_bytes + tile_bytes) + (4 << 20)
        return int(min(vmem - (2 << 20), max(32 << 20, need)))

    # ---- layer 1: h = relu(x @ W1 + b1), column-tiled over the vocab --------
    l1_limit = _limit(B_pad * S_pad * 2,
                      S_pad * tn * 2 + tn * 4 + B_pad * tn * 2)
    h = pl.pallas_call(
        _layer1_kernel,
        out_shape=jax.ShapeDtypeStruct((B_pad, V_pad), jnp.bfloat16),
        grid_spec=pltpu.PrefetchScalarGridSpec(
            num_scalar_prefetch=0,
            grid=grid,
            in_specs=[
                pl.BlockSpec((B_pad, S_pad), lambda j: (0, 0)),   # x (resident)
                pl.BlockSpec((S_pad, tn), lambda j: (0, j)),      # W1 column tile
                pl.BlockSpec((1, tn), lambda j: (0, j)),          # b1 tile
            ],
            out_specs=pl.BlockSpec((B_pad, tn), lambda j: (0, j)),
        ),
        compiler_params=pltpu.CompilerParams(
            dimension_semantics=("parallel",),
            vmem_limit_bytes=l1_limit,
        ),
        cost_estimate=pl.CostEstimate(
            flops=2 * B_pad * S_pad * V_pad,
            transcendentals=0,
            bytes_accessed=int(B_pad * S_pad * 2 + S_pad * V_pad * 2
                               + V_pad * 4 + B_pad * V_pad * 2),
        ),
    )(x_p, params["w1"], params["b1"])

    # ---- layer 2: out = h @ W2 + b2, column-tiled over the vocab ------------
    l2_limit = _limit(B_pad * V_pad * 2,
                      V_pad * tn * 2 + tn * 4 + B_pad * tn * 4)
    out_p = pl.pallas_call(
        _layer2_kernel,
        out_shape=jax.ShapeDtypeStruct((B_pad, V_pad), jnp.float32),
        grid_spec=pltpu.PrefetchScalarGridSpec(
            num_scalar_prefetch=0,
            grid=grid,
            in_specs=[
                pl.BlockSpec((B_pad, V_pad), lambda j: (0, 0)),   # h (resident, small)
                pl.BlockSpec((V_pad, tn), lambda j: (0, j)),      # W2 column tile
                pl.BlockSpec((1, tn), lambda j: (0, j)),          # b2 tile
            ],
            out_specs=pl.BlockSpec((B_pad, tn), lambda j: (0, j)),
        ),
        compiler_params=pltpu.CompilerParams(
            dimension_semantics=("parallel",),
            vmem_limit_bytes=l2_limit,
        ),
        cost_estimate=pl.CostEstimate(
            flops=2 * B_pad * V_pad * V_pad,
            transcendentals=0,
            bytes_accessed=int(B_pad * V_pad * 2 + V_pad * V_pad * 2
                               + V_pad * 4 + B_pad * V_pad * 4),
        ),
    )(h, params["w2"], params["b2"])

    return out_p[:B, :V].astype(out_dtype)


def vqa_decoder_pallas(x, w1, b1, w2, b2):
    """Convenience one-shot wrapper (prepares params every call; prefer
    prepare_decoder_params + vqa_decoder_forward for repeated inference)."""
    return vqa_decoder_forward(x, prepare_decoder_params(w1, b1, w2, b2))


# ------------------------------- test harness --------------------------------

def make_weight_norm_linear_params(key, in_features, out_features):
    """Mimics torch weight_norm(nn.Linear(...), dim=None): returns the
    *effective* weight W = g * V / ||V||_F transposed to (in, out) and bias."""
    kv, kg, kb = jax.random.split(key, 3)
    bound = 1.0 / jnp.sqrt(in_features)
    v = jax.random.uniform(kv, (out_features, in_features),
                           minval=-bound, maxval=bound, dtype=jnp.float32)
    g = jnp.linalg.norm(v) * (1.0 + 0.1 * jax.random.normal(kg, (), dtype=jnp.float32))
    w_eff = g * v / jnp.linalg.norm(v)                      # (out, in)
    b = jax.random.uniform(kb, (out_features,),
                           minval=-bound, maxval=bound, dtype=jnp.float32)
    return w_eff.T, b.reshape(1, out_features)              # (in, out), (1, out)


if __name__ == "__main__":
    B = 2
    state_dim = 32
    vocab_dim = 64

    key = jax.random.PRNGKey(0)
    kx, k1, k2 = jax.random.split(key, 3)

    x = jax.random.normal(kx, (B, state_dim), dtype=jnp.float32)
    w1, b1 = make_weight_norm_linear_params(k1, state_dim, vocab_dim)
    w2, b2 = make_weight_norm_linear_params(k2, vocab_dim, vocab_dim)

    # One-time parameter formatting (pad + bf16 cast), then the forward only
    # pads the small activation.
    params = prepare_decoder_params(w1, b1, w2, b2)
    out = vqa_decoder_forward(x, params)
    out = jax.block_until_ready(out)

    # Pure-JAX f32 reference; tolerance loosened for bf16 matmul operands.
    ref = jnp.maximum(x @ w1 + b1, 0.0) @ w2 + b2
    assert out.shape == (B, vocab_dim)
    assert jnp.allclose(out, ref, atol=2e-2, rtol=2e-2), float(
        jnp.max(jnp.abs(out - ref)))

    print("KERNEL_OK")
</pallas_src>

<mosaic_0001>
module attributes {stable_mosaic.version = 11 : i64} {
  func.func @_layer1_kernel(%arg0: i32, %arg1: memref<16x128xbf16, #tpu.memory_space<vmem>>, %arg2: memref<128x128xbf16, #tpu.memory_space<vmem>>, %arg3: memref<1x128xf32, #tpu.memory_space<vmem>>, %arg4: memref<16x128xbf16, #tpu.memory_space<vmem>>) attributes {dimension_semantics = [#tpu.dimension_semantics<parallel>], iteration_bounds = array<i64: 1>, scalar_prefetch = 0 : i64, scratch_operands = 0 : i64, tpu.core_type = #tpu.core_type<tc>, window_params = [{pipeline_mode = #tpu.pipeline_mode<synchronous>, transform_indices = @transform_0, window_bounds = array<i64: 16, 128>}, {transform_indices = @transform_1, window_bounds = array<i64: 128, 128>}, {transform_indices = @transform_2, window_bounds = array<i64: 1, 128>}, {transform_indices = @transform_3, window_bounds = array<i64: 16, 128>}]} {
    %c0 = arith.constant 0 : index
    %c0_0 = arith.constant 0 : index
    %0 = vector.load %arg1[%c0, %c0_0] : memref<16x128xbf16, #tpu.memory_space<vmem>>, vector<16x128xbf16>
    %c0_1 = arith.constant 0 : index
    %c0_2 = arith.constant 0 : index
    %1 = vector.load %arg2[%c0_1, %c0_2] : memref<128x128xbf16, #tpu.memory_space<vmem>>, vector<128x128xbf16>
    %cst = arith.constant dense<0.000000e+00> : vector<16x128xf32>
    %2 = tpu.matmul %0, %1, %cst {dimension_numbers = #tpu.dot_dimension_numbers<[1], [0], [0], [1], [0, 0, 1, 1], [], []>} : vector<16x128xbf16>, vector<128x128xbf16>, vector<16x128xf32> -> vector<16x128xf32>
    %c0_3 = arith.constant 0 : index
    %c0_4 = arith.constant 0 : index
    %3 = vector.load %arg3[%c0_3, %c0_4] : memref<1x128xf32, #tpu.memory_space<vmem>>, vector<1x128xf32>
    %4 = vector.broadcast %3 : vector<1x128xf32> to vector<16x128xf32>
    %5 = arith.addf %2, %4 : vector<16x128xf32>
    %cst_5 = arith.constant 0.000000e+00 : f32
    %6 = vector.broadcast %cst_5 : f32 to vector<16x128xf32>
    %7 = arith.maximumf %5, %6 : vector<16x128xf32>
    %8 = arith.truncf %7 : vector<16x128xf32> to vector<16x128xbf16>
    %c0_6 = arith.constant 0 : index
    %c0_7 = arith.constant 0 : index
    %9 = vector.load %arg4[%c0_6, %c0_7] : memref<16x128xbf16, #tpu.memory_space<vmem>>, vector<16x128xbf16>
    tpu.vector_store %arg4[%c0_6, %c0_7], %8 {strides = array<i32>} : memref<16x128xbf16, #tpu.memory_space<vmem>>, vector<16x128xbf16>,
    return
  }
  func.func @transform_0(%arg0: i32) -> (i32, i32) {
    %c0_i32 = arith.constant 0 : i32
    %c0_i32_0 = arith.constant 0 : i32
    %c0_i32_1 = arith.constant 0 : i32
    return %c0_i32, %c0_i32_0 : i32, i32
  }
  func.func @transform_1(%arg0: i32) -> (i32, i32) {
    %c0_i32 = arith.constant 0 : i32
    %c0_i32_0 = arith.constant 0 : i32
    return %c0_i32, %arg0 : i32, i32
  }
  func.func @transform_2(%arg0: i32) -> (i32, i32) {
    %c0_i32 = arith.constant 0 : i32
    %c0_i32_0 = arith.constant 0 : i32
    return %c0_i32, %arg0 : i32, i32
  }
  func.func @transform_3(%arg0: i32) -> (i32, i32) {
    %c0_i32 = arith.constant 0 : i32
    %c0_i32_0 = arith.constant 0 : i32
    return %c0_i32, %arg0 : i32, i32
  }
}

</mosaic_0001>

<llo_original>
// kernel: tpu_custom_call.1
$region0: #{tpu_custom_call.1}
  #allocation0 [shape = 'u32[]', space=smem, size = 0x4, offset = 0x4, fixed_abs, tag = 'smem constant byte address 0x4 - core index']
  #allocation1 [shape = 'u32[144,128]{1,0:T(1,128)}', space=vmem, size = 0x12000, scoped, tag = 'internal scratch']
  %s0 = inlined_call_operand.hbm [shape: bf16[16,128], index: 0, kind: input, shape index: {}]
  %s1 = inlined_call_operand.hbm [shape: bf16[128,128], index: 1, kind: input, shape index: {}]
  %s2 = inlined_call_operand.vmem [shape: f32[1,128], index: 2, kind: input, shape index: {}]
  %s3 = inlined_call_operand.hbm [shape: bf16[16,128], index: 3, kind: output, shape index: {}]
  %s4 = sld [smem:[#allocation0]]
  $region30: #{tpu_custom_call.1} parent=0
    _
  %s6 = ssub.s32 1, %s4
  %s7 = scalar_select 0, %s6, %s4
  $region1: #{tpu_custom_call.1} parent=0
    #allocation2 [shape = 'u8[4096]{0}', space=vmem, size = 0x1000, scoped, tag = 'input window, operand 0, single buffered']
    #allocation3 [shape = 's32[1]{0}', space=sflag, size = 0x4, scoped, tag = 'scoped memory for tpu_custom_call.1']
    #allocation4 [shape = 's32[1]{0}', space=sflag, size = 0x4, scoped, tag = 'scoped memory for tpu_custom_call.1']
    #allocation5 [shape = 'u8[32768]{0}', space=vmem, size = 0x8000, scoped, tag = 'input window, operand 1, single buffered']
    #allocation6 [shape = 's32[1]{0}', space=sflag, size = 0x4, scoped, tag = 'scoped memory for tpu_custom_call.1']
    #allocation7 [shape = 'u8[4096]{0}', space=vmem, size = 0x1000, scoped, tag = 'output window, operand 0, single buffered']
    %8 = vsyncpa [#allocation3], 0
    %9 = vsyncpa [#allocation6], 0
    %10 = vsyncpa [#allocation4], 0
    // Predicated region
    $region2: #{tpu_custom_call.1} parent=1 // pred_check
      _
    $region3: #{tpu_custom_call.1} parent=1 // pred_check_branch
      %12 = sbr.rel (0) target = $region5
    $region4: #{tpu_custom_call.1} parent=1 // pred_region
      %s14 = ssub.s32 128, 128
      %15 = vsyncadd [#allocation3], %s14
      %s16 = sshll.u32 [#allocation2], 4
      %s17 = int_to_ptr.vmem [resolvable:$true] %s16
      %22 = dma.hbm_to_vmem [thread:$0]  %s0, 128, %s17, [#allocation3], 64, 64, 4
    $region5: #{tpu_custom_call.1} parent=1 // pred_fallthru
      _
    // Predicated region
    $region6: #{tpu_custom_call.1} parent=1 // pred_check
      _
    $region7: #{tpu_custom_call.1} parent=1 // pred_check_branch
      %24 = sbr.rel (0) target = $region9
    $region8: #{tpu_custom_call.1} parent=1 // pred_region
      %s26 = ssub.s32 1024, 1024
      %27 = vsyncadd [#allocation6], %s26
      %s28 = sshll.u32 [#allocation5], 4
      %s29 = int_to_ptr.vmem [resolvable:$true] %s28
      %34 = dma.hbm_to_vmem [thread:$0]  %s1, 1024, %s29, [#allocation6], 64, 64, 4
    $region9: #{tpu_custom_call.1} parent=1 // pred_fallthru
      _
    // Predicated region
    $region10: #{tpu_custom_call.1} parent=1 // pred_check
      _
    $region11: #{tpu_custom_call.1} parent=1 // pred_check_branch
      %36 = sbr.rel (0) target = $region13
    $region12: #{tpu_custom_call.1} parent=1 // pred_region
      _
    $region13: #{tpu_custom_call.1} parent=1 // pred_fallthru
      _
    // Predicated region
    $region14: #{tpu_custom_call.1} parent=1 // pred_check
      _
    $region15: #{tpu_custom_call.1} parent=1 // pred_check_branch
      %38 = sbr.rel (0) target = $region17
    $region16: #{tpu_custom_call.1} parent=1 // pred_region
      %39 = dma.done [#allocation3], 128
    $region17: #{tpu_custom_call.1} parent=1 // pred_fallthru
      _
    // Predicated region
    $region18: #{tpu_custom_call.1} parent=1 // pred_check
      _
    $region19: #{tpu_custom_call.1} parent=1 // pred_check_branch
      %41 = sbr.rel (0) target = $region21
    $region20: #{tpu_custom_call.1} parent=1 // pred_region
      %42 = dma.done [#allocation6], 1024
    $region21: #{tpu_custom_call.1} parent=1 // pred_fallthru
      _
    %v44 = vld [vmem:[#allocation2] sm:$0xf]
    %v45 = vld [vmem:[#allocation2 + $0x4] sm:$0xf]
    %v46 = vld [vmem:[#allocation5] sm:$0xf]
    %v47 = vld [vmem:[#allocation5 + $0x4] sm:$0xf]
    %v48 = vld [vmem:[#allocation5 + $0x8] sm:$0xf]
    %v49 = vld [vmem:[#allocation5 + $0xc] sm:$0xf]
    %v50 = vld [vmem:[#allocation5 + $0x10] sm:$0xf]
    %v51 = vld [vmem:[#allocation5 + $0x14] sm:$0xf]
    %v52 = vld [vmem:[#allocation5 + $0x18] sm:$0xf]
    %v53 = vld [vmem:[#allocation5 + $0x1c] sm:$0xf]
    %v54 = vld [vmem:[#allocation5 + $0x20] sm:$0xf]
    %v55 = vld [vmem:[#allocation5 + $0x24] sm:$0xf]
    %v56 = vld [vmem:[#allocation5 + $0x28] sm:$0xf]
    %v57 = vld [vmem:[#allocation5 + $0x2c] sm:$0xf]
    %v58 = vld [vmem:[#allocation5 + $0x30] sm:$0xf]
    %v59 = vld [vmem:[#allocation5 + $0x34] sm:$0xf]
    %v60 = vld [vmem:[#allocation5 + $0x38] sm:$0xf]
    %v61 = vld [vmem:[#allocation5 + $0x3c] sm:$0xf]
    %v62 = vld [vmem:[%s2] sm:$0x1]
    %v64 = vlaneseq
    %v65 = vshrl.u32 %v64, 7
    %v66 = vsub.s32 0, %v65
    %v67 = vrot.slane %v62, %v66
    %v71 = vunpack.c.l.b16 %v44
    %v72 = vunpack.c.l.b16 %v45
    %v73 = vpack.c.b16 %v72, %v71
    %v91 = vunpack.c.l.b16 %v46
    %v92 = vunpack.c.l.b16 %v47
    %v93 = vunpack.c.l.b16 %v48
    %v94 = vunpack.c.l.b16 %v49
    %v95 = vunpack.c.l.b16 %v50
    %v96 = vunpack.c.l.b16 %v51
    %v97 = vunpack.c.l.b16 %v52
    %v98 = vunpack.c.l.b16 %v53
    %v99 = vunpack.c.l.b16 %v54
    %v100 = vunpack.c.l.b16 %v55
    %v101 = vunpack.c.l.b16 %v56
    %v102 = vunpack.c.l.b16 %v57
    %v103 = vunpack.c.l.b16 %v58
    %v104 = vunpack.c.l.b16 %v59
    %v105 = vunpack.c.l.b16 %v60
    %v106 = vunpack.c.l.b16 %v61
    %v107 = vpack.c.b16 %v92, %v91
    %v108 = vpack.c.b16 %v94, %v93
    %v109 = vpack.c.b16 %v96, %v95
    %v110 = vpack.c.b16 %v98, %v97
    %v111 = vpack.c.b16 %v100, %v99
    %v112 = vpack.c.b16 %v102, %v101
    %v113 = vpack.c.b16 %v104, %v103
    %v114 = vpack.c.b16 %v106, %v105
    %123 = vmatprep.subr.bf16.mxu0 0
    %124 = vmatpush1.bf16.msra.mxu0 %v114
    %125 = vmatprep.subr.bf16.mxu0 0
    %126 = vmatpush1.bf16.msra.mxu0 %v113
    %127 = vmatprep.subr.bf16.mxu0 0
    %128 = vmatpush1.bf16.msra.mxu0 %v112
    %129 = vmatprep.subr.bf16.mxu0 0
    %130 = vmatpush1.bf16.msra.mxu0 %v111
    %131 = vmatprep.subr.bf16.mxu0 0
    %132 = vmatpush1.bf16.msra.mxu0 %v110
    %133 = vmatprep.subr.bf16.mxu0 0
    %134 = vmatpush1.bf16.msra.mxu0 %v109
    %135 = vmatprep.subr.bf16.mxu0 0
    %136 = vmatpush1.bf16.msra.mxu0 %v108
    %137 = vmatprep.subr.bf16.mxu0 0
    %138 = vmatpush1.bf16.msra.mxu0 %v107
    %139 = vmatprep.subr.bf16.mxu0 0
    %140 = vmatpush2.bf16.msra.mxu0 0
    %141 = vmatprep.subr.bf16.mxu0 0
    %142 = vmatpush2.bf16.msra.mxu0 0
    %143 = vmatprep.subr.bf16.mxu0 0
    %144 = vmatpush2.bf16.msra.mxu0 0
    %145 = vmatprep.subr.bf16.mxu0 0
    %146 = vmatpush2.bf16.msra.mxu0 0
    %147 = vmatprep.subr.bf16.mxu0 0
    %148 = vmatpush2.bf16.msra.mxu0 0
    %149 = vmatprep.subr.bf16.mxu0 0
    %150 = vmatpush2.bf16.msra.mxu0 0
    %151 = vmatprep.subr.bf16.mxu0 0
    %152 = vmatpush2.bf16.msra.mxu0 0
    %153 = vmatprep.subr.bf16.mxu0 0
    %154 = vmatpush2.bf16.msra.mxu0 0
    %155 = vmatprep.mubr.bf16.mxu0 0
    %156 = vmatmul.mubr.bf16.gmra.mxu0 %v73
    %v157 = vpop.f32.mrf.mxu0
    %v158 = vadd.f32 %v67, %v157
    %v159 = vpop.f32.mrf.mxu0
    %v160 = vpop.f32.mrf.mxu0
    %v161 = vadd.f32 %v67, %v160
    %v162 = vpop.f32.mrf.mxu0
    %163 = vdwg.mxu0
    %v164 = vmax.f32 %v158, 0.0
    %v165 = vmax.f32 %v161, 0.0
    %v166 = vpack.c.bf16 %v165, %v164
    %v168 = vunpack.c.l.b16 %v166
    %v169 = vunpack.c.h.b16 %v166
    %v170 = vpack.c.b16 %v168, %v168
    %v171 = vpack.c.b16 %v169, %v169
    %174 = vst [vmem:[#allocation7] sm:$0xf] %v170
    %175 = vst [vmem:[#allocation7 + $0x4] sm:$0xf] %v171
    // Predicated region
    $region22: #{tpu_custom_call.1} parent=1 // pred_check
      _
    $region23: #{tpu_custom_call.1} parent=1 // pred_check_branch
      %177 = sbr.rel (0) target = $region25
    $region24: #{tpu_custom_call.1} parent=1 // pred_region
      %s179 = ssub.s32 128, 128
      %180 = vsyncadd [#allocation4], %s179
      %s181 = sshll.u32 [#allocation7], 4
      %s182 = int_to_ptr.vmem [resolvable:$true] %s181
      %187 = dma.vmem_to_hbm [thread:$0]  %s182, 128, %s3, [#allocation4], 64, 64, 4
    $region25: #{tpu_custom_call.1} parent=1 // pred_fallthru
      _
    // Predicated region
    $region26: #{tpu_custom_call.1} parent=1 // pred_check
      _
    $region27: #{tpu_custom_call.1} parent=1 // pred_check_branch
      %189 = sbr.rel (0) target = $region29
    $region28: #{tpu_custom_call.1} parent=1 // pred_region
      %190 = dma.done [#allocation4], 128
    $region29: #{tpu_custom_call.1} parent=1 // pred_fallthru
      _
    %191 = vsyncpa [#allocation3], 1
    %192 = vsyncpa [#allocation6], 1
    %193 = vsyncpa [#allocation4], 1

</llo_original>
